<compile_context>
chip_gen: v5e
topology: v5e:2x2
jax: 0.10.0
libtpu: 0.0.40
codegen_flags: <defaults>
</compile_context>

<pallas_src>
import jax
import jax.numpy as jnp
from jax.experimental import pallas as pl
from jax.experimental.pallas import tpu as pltpu


_MAX_BATCH_TILE = 512  # lanes per grid step; tiny F/H keeps blocks far under VMEM on v5e/v6e/v7x


def _eval_kernel(xT_ref, w_eff_ref, b_eff_ref, o_ref):
    # out^T[0, b] = sum_f x^T[f, b] * w_eff[f, 0] + b_eff      (VPU mul + sublane reduce)
    contrib = xT_ref[...] * w_eff_ref[...]                      # (F, TB) * (F, 1) -> (F, TB)
    out = jnp.sum(contrib, axis=0, keepdims=True) + b_eff_ref[0]
    o_ref[...] = out.astype(o_ref.dtype)


def _train_kernel(xT_ref, w1T_ref, b1_ref, maskT_ref, w2_ref, b2_ref, o_ref):
    # linear1 on the MXU: h^T = w1^T @ x^T + b1                 -> (H, TB)
    hT = jnp.dot(w1T_ref[...], xT_ref[...],
                 preferred_element_type=jnp.float32) + b1_ref[...]
    # dropout: mask is pre-scaled to {0, 1/(1-p)}
    hT = hT * maskT_ref[...]
    # linear2 as a VPU FMA chain + sublane reduce (avoids an MXU pass with N=1, K=4)
    out = jnp.sum(hT * w2_ref[...], axis=0, keepdims=True) + b2_ref[0]
    o_ref[...] = out.astype(o_ref.dtype)


def _dropout_maskT(key, h, b_pad, p):
    """(H, B_pad) keep-mask, pre-scaled by 1/(1-p); keep prob = 1-p (matches nn.Dropout(p))."""
    if p <= 0.0:
        return jnp.ones((h, b_pad), jnp.float32)
    if p >= 1.0:
        return jnp.zeros((h, b_pad), jnp.float32)
    keep = jax.random.bernoulli(key, 1.0 - p, (h, b_pad))
    return keep.astype(jnp.float32) * (1.0 / (1.0 - p))


def linear_regression_forward(x, w1, b1, w2, b2, *, key=None, training=False, p=0.5):
    """x: (B, F); w1: (F, H); b1: (1, H); w2: (H, 1); b2: (1, 1).  Returns (B, 1)."""
    B, F = x.shape
    H = w1.shape[1]

    TB = B if B <= _MAX_BATCH_TILE else _MAX_BATCH_TILE
    B_pad = pl.cdiv(B, TB) * TB
    grid = (B_pad // TB,)

    xT = x.T                                            # (F, B): batch on lanes
    if B_pad != B:
        xT = jnp.pad(xT, ((0, 0), (0, B_pad - B)))

    out_shape = jax.ShapeDtypeStruct((1, B_pad), x.dtype)
    out_spec = pl.BlockSpec((1, TB), lambda i: (0, i))          # lane-dense output tile
    x_spec = pl.BlockSpec((F, TB), lambda i: (0, i))
    smem_spec = pl.BlockSpec(memory_space=pltpu.MemorySpace.SMEM)
    compiler_params = pltpu.CompilerParams(dimension_semantics=("parallel",))

    if not training:
        # Fold the two linears: one (F, 1) weight column and one scalar bias.
        w_eff = w1 @ w2                                 # (F, 1)
        b_eff = (b1 @ w2 + b2).reshape(1)               # scalar, lives in SMEM
        outT = pl.pallas_call(
            _eval_kernel,
            out_shape=out_shape,
            grid=grid,
            in_specs=[x_spec,
                      pl.BlockSpec((F, 1), lambda i: (0, 0)),
                      smem_spec],
            out_specs=out_spec,
            compiler_params=compiler_params,
        )(xT, w_eff, b_eff)
    else:
        if key is None:
            key = jax.random.PRNGKey(0)
        maskT = _dropout_maskT(key, H, B_pad, p)        # (H, B_pad): distinct per batch tile
        w1T = w1.T                                      # (H, F)
        b1c = b1.reshape(H, 1)                          # (H, 1): broadcast along lanes
        b2s = b2.reshape(1)                             # scalar, lives in SMEM
        outT = pl.pallas_call(
            _train_kernel,
            out_shape=out_shape,
            grid=grid,
            in_specs=[x_spec,
                      pl.BlockSpec((H, F), lambda i: (0, 0)),   # weights stay VMEM-resident
                      pl.BlockSpec((H, 1), lambda i: (0, 0)),
                      pl.BlockSpec((H, TB), lambda i: (0, i)),
                      pl.BlockSpec((H, 1), lambda i: (0, 0)),
                      smem_spec],
            out_specs=out_spec,
            compiler_params=compiler_params,
        )(xT, w1T, b1c, maskT, w2, b2s)

    return outT[:, :B].T                                # (B, 1), matches the PyTorch module


if __name__ == "__main__":
    # Small shapes implied by the module: input features F, hidden 4, output 1.
    B, F, H = 8, 8, 4

    key = jax.random.PRNGKey(0)
    kx, kw1, kb1, kw2, kb2, kdrop = jax.random.split(key, 6)

    x = jax.random.normal(kx, (B, F), dtype=jnp.float32)

    # Deterministic init mimicking torch's default Linear init bound 1/sqrt(fan_in).
    bound1 = 1.0 / jnp.sqrt(jnp.float32(F))
    w1 = jax.random.uniform(kw1, (F, H), jnp.float32, -bound1, bound1)
    b1 = jax.random.uniform(kb1, (1, H), jnp.float32, -bound1, bound1)
    bound2 = 1.0 / jnp.sqrt(jnp.float32(H))
    w2 = jax.random.uniform(kw2, (H, 1), jnp.float32, -bound2, bound2)
    b2 = jax.random.uniform(kb2, (1, 1), jnp.float32, -bound2, bound2)

    # Eval mode (dropout = identity): fused single-pass kernel vs pure-JAX reference.
    out_eval = jax.block_until_ready(
        linear_regression_forward(x, w1, b1, w2, b2, training=False))
    ref_eval = (x @ w1 + b1) @ w2 + b2
    assert out_eval.shape == (B, 1)
    assert jnp.allclose(out_eval, ref_eval, atol=1e-5, rtol=1e-5)

    # Training mode: rebuild the exact same mask for a pure-JAX reference.
    p = 0.5
    out_train = jax.block_until_ready(
        linear_regression_forward(x, w1, b1, w2, b2, key=kdrop, training=True, p=p))
    maskT = _dropout_maskT(kdrop, H, B, p)              # B_pad == B at this size
    ref_train = ((x @ w1 + b1) * maskT.T) @ w2 + b2
    assert out_train.shape == (B, 1)
    assert jnp.allclose(out_train, ref_train, atol=1e-5, rtol=1e-5)

    print("KERNEL_OK")
</pallas_src>

<mosaic_0001>
module attributes {stable_mosaic.version = 11 : i64} {
  func.func @_eval_kernel(%arg0: i32, %arg1: memref<8x8xf32, #tpu.memory_space<vmem>>, %arg2: memref<8x1xf32, #tpu.memory_space<vmem>>, %arg3: memref<1xf32, #tpu.memory_space<smem>>, %arg4: memref<1x8xf32, #tpu.memory_space<vmem>>) attributes {dimension_semantics = [#tpu.dimension_semantics<parallel>], iteration_bounds = array<i64: 1>, scalar_prefetch = 0 : i64, scratch_operands = 0 : i64, tpu.core_type = #tpu.core_type<tc>, window_params = [{transform_indices = @transform_0, window_bounds = array<i64: 8, 8>}, {pipeline_mode = #tpu.pipeline_mode<synchronous>, transform_indices = @transform_1, window_bounds = array<i64: 8, 1>}, {transform_indices = @transform_2, window_bounds = array<i64: 1>}, {transform_indices = @transform_3, window_bounds = array<i64: 1, 8>}]} {
    %c0 = arith.constant 0 : index
    %c0_0 = arith.constant 0 : index
    %0 = vector.load %arg1[%c0, %c0_0] : memref<8x8xf32, #tpu.memory_space<vmem>>, vector<8x8xf32>
    %c0_1 = arith.constant 0 : index
    %c0_2 = arith.constant 0 : index
    %1 = vector.load %arg2[%c0_1, %c0_2] : memref<8x1xf32, #tpu.memory_space<vmem>>, vector<8x1xf32>
    %2 = vector.broadcast %1 : vector<8x1xf32> to vector<8x8xf32>
    %3 = arith.mulf %0, %2 : vector<8x8xf32>
    %cst = arith.constant dense<0.000000e+00> : vector<8xf32>
    %4 = vector.multi_reduction <add>, %3, %cst [0] : vector<8x8xf32> to vector<8xf32>
    %5 = vector.shape_cast %4 : vector<8xf32> to vector<1x8xf32>
    %c0_3 = arith.constant 0 : index
    %6 = memref.load %arg3[%c0_3] : memref<1xf32, #tpu.memory_space<smem>>
    %7 = vector.broadcast %6 : f32 to vector<1x8xf32>
    %8 = arith.addf %5, %7 : vector<1x8xf32>
    %c0_4 = arith.constant 0 : index
    %c0_5 = arith.constant 0 : index
    %9 = vector.load %arg4[%c0_4, %c0_5] : memref<1x8xf32, #tpu.memory_space<vmem>>, vector<1x8xf32>
    tpu.vector_store %arg4[%c0_4, %c0_5], %8 {strides = array<i32>} : memref<1x8xf32, #tpu.memory_space<vmem>>, vector<1x8xf32>,
    return
  }
  func.func @transform_0(%arg0: i32) -> (i32, i32) {
    %c0_i32 = arith.constant 0 : i32
    %c0_i32_0 = arith.constant 0 : i32
    return %c0_i32, %arg0 : i32, i32
  }
  func.func @transform_1(%arg0: i32) -> (i32, i32) {
    %c0_i32 = arith.constant 0 : i32
    %c0_i32_0 = arith.constant 0 : i32
    %c0_i32_1 = arith.constant 0 : i32
    return %c0_i32, %c0_i32_0 : i32, i32
  }
  func.func @transform_2(%arg0: i32) -> i32 {
    %c0_i32 = arith.constant 0 : i32
    %c0_i32_0 = arith.constant 0 : i32
    return %c0_i32 : i32
  }
  func.func @transform_3(%arg0: i32) -> (i32, i32) {
    %c0_i32 = arith.constant 0 : i32
    %c0_i32_0 = arith.constant 0 : i32
    return %c0_i32, %arg0 : i32, i32
  }
}

</mosaic_0001>

<llo_original>
// kernel: tpu_custom_call.1
$region0: #{tpu_custom_call.1}
  #allocation0 [shape = 'u32[]', space=smem, size = 0x4, offset = 0x4, fixed_abs, tag = 'smem constant byte address 0x4 - core index']
  #allocation1 [shape = 'u32[72,128]{1,0:T(1,128)}', space=vmem, size = 0x9000, scoped, tag = 'internal scratch']
  #allocation2 [shape = 'f32[1]{0:T(128)S(6)}', space=smem, size = 0x200, scoped, tag = 'scoped memory for tpu_custom_call.1']
  %s0 = inlined_call_operand.vmem [shape: f32[8,8], index: 0, kind: input, shape index: {}]
  %s1 = inlined_call_operand.vmem [shape: f32[8,1], index: 1, kind: input, shape index: {}]
  %s2 = inlined_call_operand.<no memory space> [shape: f32[1], index: 2, kind: input, shape index: {}]
  %s3 = inlined_call_operand.hbm [shape: f32[1,8], index: 3, kind: output, shape index: {}]
  %s4 = sld [smem:[#allocation0]]
  $region22: #{tpu_custom_call.1} parent=0
    _
  %s6 = ssub.s32 1, %s4
  %s7 = scalar_select 0, %s6, %s4
  %8 = sst [smem:[#allocation2]] %s2
  $region1: #{tpu_custom_call.1} parent=0
    #allocation3 [shape = 'u8[512]{0}', space=vmem, size = 0x400, scoped, tag = 'output window, operand 0, single buffered']
    #allocation4 [shape = 's32[1]{0}', space=sflag, size = 0x4, scoped, tag = 'scoped memory for tpu_custom_call.1']
    %9 = vsyncpa [#allocation4], 0
    // Predicated region
    $region2: #{tpu_custom_call.1} parent=1 // pred_check
      _
    $region3: #{tpu_custom_call.1} parent=1 // pred_check_branch
      %11 = sbr.rel (0) target = $region5
    $region4: #{tpu_custom_call.1} parent=1 // pred_region
      _
    $region5: #{tpu_custom_call.1} parent=1 // pred_fallthru
      _
    // Predicated region
    $region6: #{tpu_custom_call.1} parent=1 // pred_check
      _
    $region7: #{tpu_custom_call.1} parent=1 // pred_check_branch
      %13 = sbr.rel (0) target = $region9
    $region8: #{tpu_custom_call.1} parent=1 // pred_region
      _
    $region9: #{tpu_custom_call.1} parent=1 // pred_fallthru
      _
    // Predicated region
    $region10: #{tpu_custom_call.1} parent=1 // pred_check
      _
    $region11: #{tpu_custom_call.1} parent=1 // pred_check_branch
      %15 = sbr.rel (0) target = $region13
    $region12: #{tpu_custom_call.1} parent=1 // pred_region
      _
    $region13: #{tpu_custom_call.1} parent=1 // pred_fallthru
      _
    %v16 = vld [vmem:[%s0] sm:$0xff]
    %v17 = vld [vmem:[%s1] sm:$0xff]
    %19 = vset.pattern.permute.xlu0 0
    %20 = vperm.xlu0 %19, %v17
    %v21 = vpop.permute.xlu0 %20
    %v23 = vmul.f32 %v16, %v21
    %vm24 = vcmask 64512
    %v25 = vsel %vm24, %v23, 0.0
    %v26 = vrot.slane %v25, 4
    %v27 = vadd.f32 %v25, %v26
    %v28 = vrot.slane %v27, 2
    %v29 = vadd.f32 %v27, %v28
    %v30 = vrot.slane %v29, 1
    %v31 = vadd.f32 %v29, %v30
    %s32 = sld [smem:[#allocation2]]
    %v33 = vstv %s32
    %v34 = vadd.f32 %v31, %v33
    %vm35 = vcmask 57344
    %36 = vst.msk [vmem:[#allocation3] sm:$0x1] %vm35, %v34
    // Predicated region
    $region14: #{tpu_custom_call.1} parent=1 // pred_check
      _
    $region15: #{tpu_custom_call.1} parent=1 // pred_check_branch
      %38 = sbr.rel (0) target = $region17
    $region16: #{tpu_custom_call.1} parent=1 // pred_region
      %40 = vsyncadd [#allocation4], 0
      %s42 = sshll.u32 [#allocation3], 4
      %s43 = int_to_ptr.vmem [resolvable:$true] %s42
      %s44 = sshll.u32 %s3, 4
      %s45 = int_to_ptr.hbm [resolvable:$true] %s44
      %47 = dma.vmem_to_hbm [thread:$0]  %s43, 16, %s45, [#allocation4]
    $region17: #{tpu_custom_call.1} parent=1 // pred_fallthru
      _
    // Predicated region
    $region18: #{tpu_custom_call.1} parent=1 // pred_check
      _
    $region19: #{tpu_custom_call.1} parent=1 // pred_check_branch
      %49 = sbr.rel (0) target = $region21
    $region20: #{tpu_custom_call.1} parent=1 // pred_region
      %51 = dma.done [#allocation4], 16
    $region21: #{tpu_custom_call.1} parent=1 // pred_fallthru
      _
    %52 = vsyncpa [#allocation4], 1

</llo_original>
